<compile_context>
chip_gen: v5e
topology: v5e:2x2
jax: 0.10.0
libtpu: 0.0.40
codegen_flags: <defaults>
</compile_context>

<pallas_src>
import functools

import jax
import jax.numpy as jnp
from jax.experimental import pallas as pl
from jax.experimental.pallas import tpu as pltpu


def _make_conv1x1_kernel(c_in: int, c_out: int, use_mxu: bool):
    """Kernel body closure; channel counts are static (baked in)."""

    def kernel(x_ref, w_ref, o_ref):
        # x_ref: (C_in, T_S) spatial-lane tile, w_ref: (C_out, C_in) full weight,
        # o_ref: (C_out, T_S) output tile (already in NCHW order).
        x = x_ref[...]
        w = w_ref[...]
        if use_mxu:
            out = jnp.dot(w, x, preferred_element_type=jnp.float32)
        else:
            # Tiny channel counts: skip the MXU, do a VPU broadcast-FMA over
            # the (unrolled) C_in axis on lane-dense spatial tiles.
            xf = x.astype(jnp.float32)
            wf = w.astype(jnp.float32)
            out = wf[:, 0:1] * xf[0:1, :]          # (C_out,1) * (1,T_S) -> (C_out,T_S)
            for ic in range(1, c_in):
                out = out + wf[:, ic:ic + 1] * xf[ic:ic + 1, :]
        o_ref[...] = out.astype(o_ref.dtype)

    return kernel


def conv1by1_pallas(
    x_nchw: jax.Array,
    weight_oihw: jax.Array,
    spatial_tile: int = 1024,
) -> jax.Array:
    """1x1 Conv2d, no bias. x: (N, C_in, H, W), weight: (C_out, C_in, 1, 1)."""
    n, c_in, h, w = x_nchw.shape
    c_out = weight_oihw.shape[0]
    s = h * w

    # ---- tile sizing: lane axis is spatial; tile must be a multiple of 128 ----
    ts_max = max(128, pl.cdiv(spatial_tile, 128) * 128)
    s_lane = pl.cdiv(s, 128) * 128           # S rounded up to the lane quantum
    ts = min(ts_max, s_lane)                 # tile size (multiple of 128)
    s_pad = pl.cdiv(s, ts) * ts              # padded spatial extent
    n_s_tiles = s_pad // ts

    # ---- glue: (N, C_in, H, W) -> (N, C_in, S_pad); pure reshape + zero pad ----
    x3 = x_nchw.reshape(n, c_in, s)
    if s_pad != s:
        x3 = jnp.pad(x3, ((0, 0), (0, 0), (0, s_pad - s)))
    w_mat = weight_oihw.reshape(c_out, c_in)

    # ---- VMEM budget: 2x double-buffered in/out tiles + weight, with margin ----
    itemsize = jnp.dtype(x_nchw.dtype).itemsize
    tile_bytes = (c_in + c_out) * ts * itemsize
    w_bytes = c_in * c_out * itemsize
    vmem_limit = int(min(max(4 * tile_bytes + 4 * w_bytes + (2 << 20), 8 << 20),
                         48 << 20))  # stay well under v7x's 64 MiB physical VMEM

    # MXU only pays off once the channel dims are non-trivial.
    use_mxu = (c_in * c_out) > 64
    # TODO(synk): for large C_in/C_out, add C_out (N) and C_in (K, "arbitrary",
    # f32 accumulator) grid axes so the full weight need not live in VMEM.

    kernel = _make_conv1x1_kernel(c_in, c_out, use_mxu)

    out3 = pl.pallas_call(
        kernel,
        out_shape=jax.ShapeDtypeStruct((n, c_out, s_pad), x_nchw.dtype),
        grid_spec=pltpu.PrefetchScalarGridSpec(
            num_scalar_prefetch=0,
            grid=(n, n_s_tiles),
            in_specs=[
                # batch dim squeezed out of the kernel view (None).
                pl.BlockSpec((None, c_in, ts), lambda b, j: (b, 0, j)),
                pl.BlockSpec((c_out, c_in), lambda b, j: (0, 0)),
            ],
            out_specs=pl.BlockSpec((None, c_out, ts), lambda b, j: (b, 0, j)),
        ),
        compiler_params=pltpu.CompilerParams(
            dimension_semantics=("parallel", "parallel"),
            vmem_limit_bytes=vmem_limit,
        ),
    )(x3, w_mat)

    # ---- glue: drop spatial padding, restore (N, C_out, H, W) ----
    return out3[:, :, :s].reshape(n, c_out, h, w)


if __name__ == "__main__":
    key = jax.random.PRNGKey(0)
    k_w, k_x = jax.random.split(key)

    # Conv2d(in_channels=2, out_channels=1, kernel_size=1, bias=False)
    c_in, c_out = 2, 1
    weight = jax.random.normal(k_w, (c_out, c_in, 1, 1), dtype=jnp.float32) * 0.5

    # small NCHW input consistent with the module's forward
    x = jax.random.normal(k_x, (2, c_in, 16, 16), dtype=jnp.float32)

    y = conv1by1_pallas(x, weight)
    y = jax.block_until_ready(y)

    # reference check in plain JAX (einsum over channel dim)
    y_ref = jnp.einsum("nchw,oc->nohw", x, weight.reshape(c_out, c_in))
    assert y.shape == (2, c_out, 16, 16)
    assert jnp.allclose(y, y_ref, atol=1e-5, rtol=1e-5)

    # also exercise a non-lane-aligned spatial size to validate padding path
    x2 = jax.random.normal(k_x, (3, c_in, 7, 9), dtype=jnp.float32)
    y2 = jax.block_until_ready(conv1by1_pallas(x2, weight))
    y2_ref = jnp.einsum("nchw,oc->nohw", x2, weight.reshape(c_out, c_in))
    assert jnp.allclose(y2, y2_ref, atol=1e-5, rtol=1e-5)

    print("KERNEL_OK")
</pallas_src>

<mosaic_0001>
module attributes {stable_mosaic.version = 11 : i64} {
  func.func @kernel(%arg0: i32, %arg1: i32, %arg2: memref<1x2x256xf32, #tpu.memory_space<vmem>>, %arg3: memref<1x2xf32, #tpu.memory_space<vmem>>, %arg4: memref<1x1x256xf32, #tpu.memory_space<vmem>>) attributes {dimension_semantics = [#tpu.dimension_semantics<parallel>, #tpu.dimension_semantics<parallel>], iteration_bounds = array<i64: 2, 1>, scalar_prefetch = 0 : i64, scratch_operands = 0 : i64, tpu.core_type = #tpu.core_type<tc>, window_params = [{transform_indices = @transform_0, window_bounds = array<i64: 1, 2, 256>}, {pipeline_mode = #tpu.pipeline_mode<synchronous>, transform_indices = @transform_1, window_bounds = array<i64: 1, 2>}, {transform_indices = @transform_2, window_bounds = array<i64: 1, 1, 256>}]} {
    %c0 = arith.constant 0 : index
    %c0_0 = arith.constant 0 : index
    %c0_1 = arith.constant 0 : index
    %0 = vector.load %arg2[%c0, %c0_0, %c0_1] : memref<1x2x256xf32, #tpu.memory_space<vmem>>, vector<1x2x256xf32>
    %1 = vector.shape_cast %0 : vector<1x2x256xf32> to vector<2x256xf32>
    %c0_2 = arith.constant 0 : index
    %c0_3 = arith.constant 0 : index
    %2 = vector.load %arg3[%c0_2, %c0_3] : memref<1x2xf32, #tpu.memory_space<vmem>>, vector<1x2xf32>
    %3 = vector.extract_strided_slice %2 {offsets = [0, 0], sizes = [1, 1], strides = [1, 1]} : vector<1x2xf32> to vector<1x1xf32>
    %4 = vector.extract_strided_slice %1 {offsets = [0, 0], sizes = [1, 256], strides = [1, 1]} : vector<2x256xf32> to vector<1x256xf32>
    %5 = vector.broadcast %3 : vector<1x1xf32> to vector<1x256xf32>
    %6 = arith.mulf %5, %4 : vector<1x256xf32>
    %7 = vector.extract_strided_slice %2 {offsets = [0, 1], sizes = [1, 1], strides = [1, 1]} : vector<1x2xf32> to vector<1x1xf32>
    %8 = vector.extract_strided_slice %1 {offsets = [1, 0], sizes = [1, 256], strides = [1, 1]} : vector<2x256xf32> to vector<1x256xf32>
    %9 = vector.broadcast %7 : vector<1x1xf32> to vector<1x256xf32>
    %10 = arith.mulf %9, %8 : vector<1x256xf32>
    %11 = arith.addf %6, %10 : vector<1x256xf32>
    %c0_4 = arith.constant 0 : index
    %c0_5 = arith.constant 0 : index
    %c0_6 = arith.constant 0 : index
    %12 = vector.load %arg4[%c0_4, %c0_5, %c0_6] : memref<1x1x256xf32, #tpu.memory_space<vmem>>, vector<1x1x256xf32>
    %13 = vector.shape_cast %12 : vector<1x1x256xf32> to vector<1x256xf32>
    %14 = vector.shape_cast %11 : vector<1x256xf32> to vector<1x1x256xf32>
    tpu.vector_store %arg4[%c0_4, %c0_5, %c0_6], %14 {strides = array<i32>} : memref<1x1x256xf32, #tpu.memory_space<vmem>>, vector<1x1x256xf32>,
    return
  }
  func.func @transform_0(%arg0: i32, %arg1: i32) -> (i32, i32, i32) {
    %c0_i32 = arith.constant 0 : i32
    %c0_i32_0 = arith.constant 0 : i32
    return %arg0, %c0_i32, %arg1 : i32, i32, i32
  }
  func.func @transform_1(%arg0: i32, %arg1: i32) -> (i32, i32) {
    %c0_i32 = arith.constant 0 : i32
    %c0_i32_0 = arith.constant 0 : i32
    %c0_i32_1 = arith.constant 0 : i32
    return %c0_i32, %c0_i32_0 : i32, i32
  }
  func.func @transform_2(%arg0: i32, %arg1: i32) -> (i32, i32, i32) {
    %c0_i32 = arith.constant 0 : i32
    %c0_i32_0 = arith.constant 0 : i32
    return %arg0, %c0_i32, %arg1 : i32, i32, i32
  }
}

</mosaic_0001>

<llo_original>
// kernel: tpu_custom_call.1
$region0: #{tpu_custom_call.1}
  #allocation0 [shape = 'u32[]', space=smem, size = 0x4, offset = 0x4, fixed_abs, tag = 'smem constant byte address 0x4 - core index']
  #allocation1 [shape = 'u32[72,128]{1,0:T(1,128)}', space=vmem, size = 0x9000, scoped, tag = 'internal scratch']
  %s0 = inlined_call_operand.hbm [shape: f32[2,2,256], index: 0, kind: input, shape index: {}]
  %s1 = inlined_call_operand.hbm [shape: f32[1,2], index: 1, kind: input, shape index: {}]
  %s2 = inlined_call_operand.hbm [shape: f32[2,1,256], index: 2, kind: output, shape index: {}]
  %s3 = sld [smem:[#allocation0]]
  $region49: #{tpu_custom_call.1} parent=0
    _
  %s5 = ssub.s32 1, %s3
  %s6 = scalar_select 0, %s5, %s3
  $region1: #{tpu_custom_call.1} parent=0
    #allocation2 [shape = 'u8[4096]{0}', space=vmem, size = 0x1000, scoped, tag = 'input window, operand 0']
    #allocation3 [shape = 's32[2]{0}', space=sflag, size = 0x8, scoped, tag = 'scoped memory for tpu_custom_call.1']
    #allocation4 [shape = 's32[2]{0}', space=sflag, size = 0x8, scoped, tag = 'scoped memory for tpu_custom_call.1']
    #allocation5 [shape = 'u8[512]{0}', space=vmem, size = 0x400, scoped, tag = 'input window, operand 1, single buffered']
    #allocation6 [shape = 's32[1]{0}', space=sflag, size = 0x4, scoped, tag = 'scoped memory for tpu_custom_call.1']
    #allocation7 [shape = 'u8[2048]{0}', space=vmem, size = 0x800, scoped, tag = 'output window, operand 0']
    %7 = vsyncpa [#allocation3], 0
    %s8 = scalar_lea.sflag [#allocation3], 1
    %9 = vsyncpa %s8, 0
    %10 = vsyncpa [#allocation6], 0
    %11 = vsyncpa [#allocation4], 0
    %s12 = scalar_lea.sflag [#allocation4], 1
    %13 = vsyncpa %s12, 0
    loop: start=0, step=1, limit=4
    $region2: #{tpu_custom_call.1} parent=1 // loop_pre_header
      _
    $region3: #{tpu_custom_call.1} parent=1 // loop_header
      %s15 = sphi 0, %s19
      %p16 = scmp.ge.s32.totalorder %s15, 4
      %s22 = sphi 0, %s34
      %s23 = sphi 0, %s30
      %s24 = sphi 0, %s22
      %s25 = sphi 0, %s23
      %s26 = sphi 0, %s24
      %s27 = sphi 0, %s25
      %s39 = sphi 0, %s41
      %s42 = sphi 0, %s39
      %s43 = sphi 0, %s42
      %s59 = sphi 0, %s43
      %s63 = sphi 0, %s63
      %s65 = sphi 0, %s63
      %s66 = sphi 0, %s65
      %s80 = sphi 0, %s66
      %s88 = sphi 0, %s90
      %s91 = sphi 0, %s88
      %s92 = sphi 0, %s91
      %s108 = sphi 0, %s92
    $region4: #{tpu_custom_call.1} parent=1 // loop_header_branch
      %18 = sbr.rel (%p16) target = $region8
    $region5: #{tpu_custom_call.1} parent=1 // loop_body
      %s20 = ssub.s32 %s15, 1
      %s21 = ssub.s32 %s15, 2
      %s28 = sadd.s32 1, %s23
      %p29 = scmp.ge.s32.totalorder %s28, 1
      %s30 = scalar_select %p29, 0, %s28
      %s31 = sadd.s32 1, %s22
      %s32 = scalar_select %p29, %s31, %s22
      %p33 = scmp.ge.s32.totalorder %s32, 2
      %s34 = scalar_select %p33, 0, %s32
      %s35 = ssub.s32 %s22, %s34
      %s36 = ssub.s32 %s23, %s30
      %s37 = sor.u32 %s35, %s36
      %p38 = scmp.eq.s32.totalorder %s37, 0
      %s40 = sadd.s32 %s39, 1
      %s41 = scalar_select %p38, %s39, %s40
      %p44 = pneg %p38
      %p45 = scmp.eq.s32.totalorder %s15, 1
      %p46 = por %p44, %p45
      %p47 = scmp.ne.s32.totalorder %s39, %s42
      %p48 = scmp.eq.s32.totalorder %s15, 0
      %p49 = por %p47, %p48
      %p50 = scmp.ne.s32.totalorder %s39, %s42
      %p51 = scmp.eq.s32.totalorder %s20, 1
      %p52 = por %p50, %p51
      %p53 = scmp.ne.s32.totalorder %s42, %s43
      %p54 = scmp.eq.s32.totalorder %s20, 0
      %p55 = por %p53, %p54
      %p56 = scmp.ne.s32.totalorder %s42, %s43
      %p57 = scmp.eq.s32.totalorder %s21, 1
      %p58 = por %p56, %p57
      %p60 = scmp.ne.s32.totalorder %s43, %s59
      %p61 = scmp.eq.s32.totalorder %s21, 0
      %p62 = por %p60, %p61
      %s64 = sadd.s32 %s63, 1
      %p67 = scmp.eq.s32.totalorder %s15, 1
      %p68 = scmp.ne.s32.totalorder %s63, %s65
      %p69 = scmp.eq.s32.totalorder %s15, 0
      %p70 = por %p68, %p69
      %p71 = scmp.ne.s32.totalorder %s63, %s65
      %p72 = scmp.eq.s32.totalorder %s20, 1
      %p73 = por %p71, %p72
      %p74 = scmp.ne.s32.totalorder %s65, %s66
      %p75 = scmp.eq.s32.totalorder %s20, 0
      %p76 = por %p74, %p75
      %p77 = scmp.ne.s32.totalorder %s65, %s66
      %p78 = scmp.eq.s32.totalorder %s21, 1
      %p79 = por %p77, %p78
      %p81 = scmp.ne.s32.totalorder %s66, %s80
      %p82 = scmp.eq.s32.totalorder %s21, 0
      %p83 = por %p81, %p82
      %s84 = ssub.s32 %s22, %s34
      %s85 = ssub.s32 %s23, %s30
      %s86 = sor.u32 %s84, %s85
      %p87 = scmp.eq.s32.totalorder %s86, 0
      %s89 = sadd.s32 %s88, 1
      %s90 = scalar_select %p87, %s88, %s89
      %p93 = pneg %p87
      %p94 = scmp.eq.s32.totalorder %s15, 1
      %p95 = por %p93, %p94
      %p96 = scmp.ne.s32.totalorder %s88, %s91
      %p97 = scmp.eq.s32.totalorder %s15, 0
      %p98 = por %p96, %p97
      %p99 = scmp.ne.s32.totalorder %s88, %s91
      %p100 = scmp.eq.s32.totalorder %s20, 1
      %p101 = por %p99, %p100
      %p102 = scmp.ne.s32.totalorder %s91, %s92
      %p103 = scmp.eq.s32.totalorder %s20, 0
      %p104 = por %p102, %p103
      %p105 = scmp.ne.s32.totalorder %s91, %s92
      %p106 = scmp.eq.s32.totalorder %s21, 1
      %p107 = por %p105, %p106
      %p109 = scmp.ne.s32.totalorder %s92, %s108
      %p110 = scmp.eq.s32.totalorder %s21, 0
      %p111 = por %p109, %p110
      %p112 = scmp.le.s32.totalorder 1, %s15
      %p113 = scmp.lt.s32.totalorder %s15, 3
      %p114 = pnand %p112, %p113
      %p115 = pneg %p114
      // Predicated region
      $region9: #{tpu_custom_call.1} parent=5 // pred_check
        _
      $region10: #{tpu_custom_call.1} parent=5 // pred_check_branch
        %117 = sbr.rel (%p114) target = $region12
      $region11: #{tpu_custom_call.1} parent=5 // pred_region
        %s118 = ssub.s32 %s15, 1
        // Predicated region
        $region13: #{tpu_custom_call.1} parent=11 // pred_check
          %p119 = pneg %p76
        $region14: #{tpu_custom_call.1} parent=11 // pred_check_branch
          %121 = sbr.rel (%p119) target = $region16
        $region15: #{tpu_custom_call.1} parent=11 // pred_region
          %123 = vsyncadd [#allocation6], 0
          %s125 = sshll.u32 %s1, 4
          %s126 = int_to_ptr.hbm [resolvable:$true] %s125
          %s127 = sshll.u32 [#allocation5], 4
          %s128 = int_to_ptr.vmem [resolvable:$true] %s127
          %130 = dma.hbm_to_vmem [thread:$0]  %s126, 16, %s128, [#allocation6]
        $region16: #{tpu_custom_call.1} parent=11 // pred_fallthru
          _
      $region12: #{tpu_custom_call.1} parent=5 // pred_fallthru
        _
      %p131 = scmp.lt.s32.totalorder %s15, 2
      // Predicated region
      $region17: #{tpu_custom_call.1} parent=5 // pred_check
        %p132 = pneg %p131
      $region18: #{tpu_custom_call.1} parent=5 // pred_check_branch
        %134 = sbr.rel (%p132) target = $region20
      $region19: #{tpu_custom_call.1} parent=5 // pred_region
        // Predicated region
        $region21: #{tpu_custom_call.1} parent=19 // pred_check
          %p135 = pneg %p49
        $region22: #{tpu_custom_call.1} parent=19 // pred_check_branch
          %137 = sbr.rel (%p135) target = $region24
        $region23: #{tpu_custom_call.1} parent=19 // pred_region
          %s138 = sand.u32 %s39, 1
          %s139 = scalar_lea.sflag [#allocation3], %s138
          %s140 = sand.u32 %s39, 1
          %s141 = smul.addr %s140, 4
          %s142 = scalar_lea.vmem [#allocation2], %s141
          %s143 = smul.u32 2, %s23
          %145 = vsyncadd %s139, 0
          %s146 = smul.addr %s22, 2
          %s147 = sadd.s32 %s143, %s146
          %s148 = smul.addr %s147, 2
          %s149 = scalar_lea.hbm %s0, %s148
          %s151 = sshll.u32 %s149, 4
          %s152 = int_to_ptr.hbm [resolvable:$true] %s151
          %s153 = sshll.u32 %s142, 4
          %s154 = int_to_ptr.vmem [resolvable:$true] %s153
          %156 = dma.hbm_to_vmem [thread:$0]  %s152, 64, %s154, %s139
        $region24: #{tpu_custom_call.1} parent=19 // pred_fallthru
          _
      $region20: #{tpu_custom_call.1} parent=5 // pred_fallthru
        _
      %p157 = scmp.le.s32.totalorder 1, %s15
      %p158 = scmp.lt.s32.totalorder %s15, 3
      %p159 = pnand %p157, %p158
      %p160 = pneg %p159
      // Predicated region
      $region25: #{tpu_custom_call.1} parent=5 // pred_check
        _
      $region26: #{tpu_custom_call.1} parent=5 // pred_check_branch
        %162 = sbr.rel (%p159) target = $region28
      $region27: #{tpu_custom_call.1} parent=5 // pred_region
        %s163 = ssub.s32 %s15, 1
        %s164 = sand.u32 %s42, 1
        %s165 = scalar_lea.sflag [#allocation3], %s164
        %s166 = sand.u32 %s42, 1
        %s167 = smul.addr %s166, 4
        %s168 = scalar_lea.vmem [#allocation2], %s167
        // Predicated region
        $region29: #{tpu_custom_call.1} parent=27 // pred_check
          %p169 = pneg %p55
        $region30: #{tpu_custom_call.1} parent=27 // pred_check_branch
          %171 = sbr.rel (%p169) target = $region32
        $region31: #{tpu_custom_call.1} parent=27 // pred_region
          %173 = dma.done %s165, 64
        $region32: #{tpu_custom_call.1} parent=27 // pred_fallthru
          _
        // Predicated region
        $region33: #{tpu_custom_call.1} parent=27 // pred_check
          %p174 = pneg %p76
        $region34: #{tpu_custom_call.1} parent=27 // pred_check_branch
          %176 = sbr.rel (%p174) target = $region36
        $region35: #{tpu_custom_call.1} parent=27 // pred_region
          %178 = dma.done [#allocation6], 16
        $region36: #{tpu_custom_call.1} parent=27 // pred_fallthru
          _
        %s179 = sand.u32 %s42, 1
        %s180 = scalar_lea.sflag [#allocation3], %s179
        %s181 = sand.u32 %s42, 1
        %s182 = smul.addr %s181, 4
        %s183 = scalar_lea.vmem [#allocation2], %s182
        %p184 = pneg %p55
        %p185 = pneg %p52
        %p186 = pneg %p76
        %p187 = pneg %p73
        %p188 = pneg %p104
        %p189 = pneg %p101
        %s190 = sand.u32 %s91, 1
        %s191 = scalar_lea.sflag [#allocation4], %s190
        %s192 = sand.u32 %s91, 1
        %s193 = smul.addr %s192, 2
        %s194 = scalar_lea.vmem [#allocation7], %s193
        %s195 = smul.u32 2, %s25
        %s196 = smul.u32 2, %s25
        %v197 = vld [vmem:[%s168] sm:$0xf]
        %v198 = vld [vmem:[#allocation5] sm:$0x1]
        %200 = vset.pattern.permute.xlu0 0
        %201 = vperm.xlu0 %200, %v198
        %v202 = vpop.permute.xlu0 %201
        %v204 = vperm.slane %v202, 0
        %v205 = vmul.f32 %v204, %v197
        %206 = vset.pattern.permute.xlu0 1
        %207 = vperm.xlu0 %206, %v198
        %v208 = vpop.permute.xlu0 %207
        %v210 = vperm.slane %v208, 0
        %v211 = vmul.f32 %v210, %v197
        %v213 = vrot.slane %v211, 7
        %v214 = vrot.slane %v213, 2
        %v216 = vadd.f32 %v205, %v214
        %v218 = vrot.slane %v216, 1
        %v219 = vrot.slane %v216, 2
        %v220 = vrot.slane %v216, 3
        %vm221 = vcmask 1040384
        %v222 = vsel %vm221, %v216, %v218
        %vm223 = vcmask 1042434
        %v224 = vsel %vm223, %v219, %v220
        %vm225 = vcmask 1041408
        %v226 = vsel %vm225, %v222, %v224
        %v228 = vlaneseq
        %vm229 = vcmp.ge.s32.totalorder %v228, 0
        %vm230 = vcmp.lt.s32.totalorder %v228, 256
        %vm231 = vmand %vm229, %vm230
        %232 = vst.msk [vmem:[%s194] sm:$0x3] %vm231, %v226
        %s233 = sand.u32 %s91, 1
        %s234 = scalar_lea.sflag [#allocation4], %s233
        %s235 = sand.u32 %s91, 1
        %s236 = smul.addr %s235, 2
        %s237 = scalar_lea.vmem [#allocation7], %s236
        // Predicated region
        $region37: #{tpu_custom_call.1} parent=27 // pred_check
          %p238 = pneg %p101
        $region38: #{tpu_custom_call.1} parent=27 // pred_check_branch
          %240 = sbr.rel (%p238) target = $region40
        $region39: #{tpu_custom_call.1} parent=27 // pred_region
          %s241 = smul.u32 2, %s25
          %243 = vsyncadd %s234, 0
          %s244 = smul.addr %s24, 2
          %s245 = sadd.s32 %s241, %s244
          %s246 = scalar_lea.hbm %s2, %s245
          %s248 = sshll.u32 %s237, 4
          %s249 = int_to_ptr.vmem [resolvable:$true] %s248
          %s250 = sshll.u32 %s246, 4
          %s251 = int_to_ptr.hbm [resolvable:$true] %s250
          %253 = dma.vmem_to_hbm [thread:$0]  %s249, 32, %s251, %s234
        $region40: #{tpu_custom_call.1} parent=27 // pred_fallthru
          _
      $region28: #{tpu_custom_call.1} parent=5 // pred_fallthru
        _
      %p254 = scmp.le.s32.totalorder 2, %s15
      // Predicated region
      $region41: #{tpu_custom_call.1} parent=5 // pred_check
        %p255 = pneg %p254
      $region42: #{tpu_custom_call.1} parent=5 // pred_check_branch
        %257 = sbr.rel (%p255) target = $region44
      $region43: #{tpu_custom_call.1} parent=5 // pred_region
        %s258 = ssub.s32 %s15, 2
        // Predicated region
        $region45: #{tpu_custom_call.1} parent=43 // pred_check
          %p259 = pneg %p107
        $region46: #{tpu_custom_call.1} parent=43 // pred_check_branch
          %261 = sbr.rel (%p259) target = $region48
        $region47: #{tpu_custom_call.1} parent=43 // pred_region
          %s262 = sand.u32 %s92, 1
          %s263 = scalar_lea.sflag [#allocation4], %s262
          %s264 = sand.u32 %s92, 1
          %s265 = smul.addr %s264, 2
          %s266 = scalar_lea.vmem [#allocation7], %s265
          %268 = dma.done %s263, 32
        $region48: #{tpu_custom_call.1} parent=43 // pred_fallthru
          _
      $region44: #{tpu_custom_call.1} parent=5 // pred_fallthru
        _
    $region6: #{tpu_custom_call.1} parent=1 // loop_footer
      %s19 = sadd.s32 1, %s15
    $region7: #{tpu_custom_call.1} parent=1 // loop_footer_branch
      %14 = sbr.rel target = $region3
    $region8: #{tpu_custom_call.1} parent=1 // loop_exit
      _
    %269 = vsyncpa [#allocation3], 1
    %s270 = scalar_lea.sflag [#allocation3], 1
    %271 = vsyncpa %s270, 1
    %272 = vsyncpa [#allocation6], 1
    %273 = vsyncpa [#allocation4], 1
    %s274 = scalar_lea.sflag [#allocation4], 1
    %275 = vsyncpa %s274, 1

</llo_original>
